<compile_context>
chip_gen: v7x
topology: tpu7x:2x2x1
jax: 0.10.0
libtpu: 0.0.40
codegen_flags: <defaults>
</compile_context>

<pallas_src>
import math

import jax
import jax.numpy as jnp
from jax.experimental import pallas as pl
from jax.experimental.pallas import tpu as pltpu

NEG_SLOPE = 0.01    # F.leaky_relu default
NEG_BIG = -1e30     # finite additive sentinel for masked max (guards empty graphs)
# TODO(synk): empty-graph max-pool yields a large finite value here instead of the
# reference's -inf/NaN propagation (no empty graphs occur in this script).

# ----------------------------- static sizes / packing layout -----------------------------

N = 16        # nodes per graph-batch (padded)
G = 2         # graphs per batch
H = 32        # hidden channels (h_channels[0])
C_PAD = 16    # input channel (=1) zero-padded to the slab width

# per-batch graph slab: (G_ROWS, N), all offsets sublane (8)-aligned
OFF_ASUM = 0                    # (N, N)  sum-aggregation matrix
OFF_AMEAN = OFF_ASUM + N        # (N, N)  mean-aggregation matrix
OFF_MMEAN = OFF_AMEAN + N       # (G, N)  row-normalized mean-pool mask
OFF_MADD = OFF_MMEAN + 8        # (G, N)  additive max-pool mask (0 / NEG_BIG)
OFF_X = OFF_MADD + 8            # (N, C_PAD) node features, channel zero-padded
G_ROWS = OFF_X + N              # 64

# shared weight slab: (W_ROWS, H)
OFF_W1L = 0                     # (C_PAD, H)
OFF_W1R = OFF_W1L + C_PAD       # (C_PAD, H)
OFF_B1 = OFF_W1R + C_PAD        # row
OFF_W2L = OFF_B1 + 8            # (H, H)
OFF_W2R = OFF_W2L + H
OFF_B2 = OFF_W2R + H            # row
OFF_W3L = OFF_B2 + 8
OFF_W3R = OFF_W3L + H
OFF_B3 = OFF_W3R + H            # row
OFF_TAIL = OFF_B3 + 8           # row 0: w_fin mean half, row 1: 0.5*w_fin max half,
W_ROWS = OFF_TAIL + 8           #  row 2 col 0: final bias          -> 192 rows total


# ------------------------------------ fused Pallas kernel ------------------------------------


def _fused_gnn_kernel(g_ref, w_ref, o_ref):
    """3x (SAGEConv + leaky_relu) + mean/max pool + final Linear for one graph batch."""
    a_sum = g_ref[OFF_ASUM:OFF_ASUM + N, :]          # (N, N)
    a_mean = g_ref[OFF_AMEAN:OFF_AMEAN + N, :]       # (N, N)
    mask_mean = g_ref[OFF_MMEAN:OFF_MMEAN + G, :]    # (G, N) row-normalized
    mask_add = g_ref[OFF_MADD:OFF_MADD + G, :]       # (G, N) 0 / NEG_BIG
    x = g_ref[OFF_X:OFF_X + N, :]                    # (N, C_PAD)

    def sage(a, xv, wl, wr, b):
        agg = jnp.dot(a, xv, preferred_element_type=jnp.float32)          # (N, C)
        out = (jnp.dot(agg, wl, preferred_element_type=jnp.float32)
               + jnp.dot(xv, wr, preferred_element_type=jnp.float32)
               + b)                                                        # (N, H)
        return jnp.maximum(out, NEG_SLOPE * out)                           # leaky_relu

    h = sage(a_sum, x,
             w_ref[OFF_W1L:OFF_W1L + C_PAD, :], w_ref[OFF_W1R:OFF_W1R + C_PAD, :],
             w_ref[OFF_B1:OFF_B1 + 1, :])
    h = sage(a_sum, h,
             w_ref[OFF_W2L:OFF_W2L + H, :], w_ref[OFF_W2R:OFF_W2R + H, :],
             w_ref[OFF_B2:OFF_B2 + 1, :])
    h = sage(a_mean, h,
             w_ref[OFF_W3L:OFF_W3L + H, :], w_ref[OFF_W3R:OFF_W3R + H, :],
             w_ref[OFF_B3:OFF_B3 + 1, :])

    # pooling + final linear (no concats; VPU/XLU tail, 0.5 folded into w_max row)
    mean = jnp.dot(mask_mean, h, preferred_element_type=jnp.float32)       # (G, H)
    maxp = jnp.max(h[None, :, :] + mask_add[:, :, None], axis=1)           # (G, H)

    tail = w_ref[OFF_TAIL:OFF_TAIL + 8, :]                                 # (8, H)
    w_mean = tail[0:1, :]                                                  # (1, H)
    w_max = tail[1:2, :]                                                   # (1, H), 0.5 folded
    b_fin = tail[2:3, 0:1]                                                 # (1, 1)
    o_ref[...] = jnp.sum(mean * w_mean + maxp * w_max,
                         axis=-1, keepdims=True) + b_fin                   # (G, 1)


def gnn_forward(graph_slab, weight_slab):
    b = graph_slab.shape[0]
    return pl.pallas_call(
        _fused_gnn_kernel,
        out_shape=jax.ShapeDtypeStruct((b, G, 1), jnp.float32),
        grid=(b,),
        in_specs=[
            pl.BlockSpec((None, G_ROWS, N), lambda i: (i, 0, 0)),   # per-batch graph slab
            pl.BlockSpec((W_ROWS, H), lambda i: (0, 0)),            # weights: resident
        ],
        out_specs=pl.BlockSpec((None, G, 1), lambda i: (i, 0, 0)),
        compiler_params=pltpu.CompilerParams(dimension_semantics=("parallel",)),
    )(graph_slab, weight_slab)


# ---------------------------------------- host-side glue ----------------------------------------


def init_params():
    """Deterministic init (shapes follow the torch module; fresh synthetic weights)."""
    key = jax.random.PRNGKey(12345)
    ks = jax.random.split(key, 12)

    def lin(k, fan_in, fan_out):
        bound = 1.0 / math.sqrt(fan_in)
        return jax.random.uniform(k, (fan_in, fan_out), jnp.float32, -bound, bound)

    def bias(k, fan_in, n):
        bound = 1.0 / math.sqrt(fan_in)
        return jax.random.uniform(k, (n,), jnp.float32, -bound, bound)

    # layer 1: in=1, zero-padded to C_PAD so padded feature lanes contribute nothing
    w1_l = jnp.zeros((C_PAD, H), jnp.float32).at[:1, :].set(lin(ks[0], 1, H))
    w1_r = jnp.zeros((C_PAD, H), jnp.float32).at[:1, :].set(lin(ks[1], 1, H))
    return dict(
        w1_l=w1_l, w1_r=w1_r, b1=bias(ks[2], 1, H),
        w2_l=lin(ks[3], H, H), w2_r=lin(ks[4], H, H), b2=bias(ks[5], H, H),
        w3_l=lin(ks[6], H, H), w3_r=lin(ks[7], H, H), b3=bias(ks[8], H, H),
        w_fin=lin(ks[9], 2 * H, 1), b_fin=bias(ks[10], 2 * H, 1),
    )


def pack_weight_slab(p):
    """Pack all layer weights/biases into one (W_ROWS, H) f32 slab (single DMA)."""
    w = jnp.zeros((W_ROWS, H), jnp.float32)
    w = w.at[OFF_W1L:OFF_W1L + C_PAD, :].set(p["w1_l"])
    w = w.at[OFF_W1R:OFF_W1R + C_PAD, :].set(p["w1_r"])
    w = w.at[OFF_B1, :].set(p["b1"])
    w = w.at[OFF_W2L:OFF_W2L + H, :].set(p["w2_l"])
    w = w.at[OFF_W2R:OFF_W2R + H, :].set(p["w2_r"])
    w = w.at[OFF_B2, :].set(p["b2"])
    w = w.at[OFF_W3L:OFF_W3L + H, :].set(p["w3_l"])
    w = w.at[OFF_W3R:OFF_W3R + H, :].set(p["w3_r"])
    w = w.at[OFF_B3, :].set(p["b3"])
    w = w.at[OFF_TAIL, :].set(p["w_fin"][:H, 0])               # mean half (as a row)
    w = w.at[OFF_TAIL + 1, :].set(0.5 * p["w_fin"][H:, 0])     # max half, 0.5 folded (exact)
    w = w.at[OFF_TAIL + 2, 0].set(p["b_fin"][0])
    return w


def pack_graph_slab(x, edge_index, batch):
    """Dense aggregation matrices + pooling masks + padded features, one (G_ROWS, N) slab."""
    a_sum = jnp.zeros((N, N), jnp.float32).at[edge_index[1], edge_index[0]].add(1.0)
    deg = a_sum.sum(axis=1, keepdims=True)
    a_mean = a_sum / jnp.where(deg > 0, deg, 1.0)

    mask = (batch[None, :] == jnp.arange(G)[:, None]).astype(jnp.float32)   # (G, N)
    counts = mask.sum(axis=1, keepdims=True)
    inv_count = 1.0 / jnp.where(counts > 0, counts, 1.0)
    mask_mean = mask * inv_count                      # (mask_mean @ h) == mean pool
    mask_add = jnp.where(mask > 0, 0.0, NEG_BIG)      # additive max-pool mask

    x_pad = jnp.zeros((N, C_PAD), jnp.float32).at[:, :1].set(x)

    slab = jnp.zeros((G_ROWS, N), jnp.float32)
    slab = slab.at[OFF_ASUM:OFF_ASUM + N, :].set(a_sum)
    slab = slab.at[OFF_AMEAN:OFF_AMEAN + N, :].set(a_mean)
    slab = slab.at[OFF_MMEAN:OFF_MMEAN + G, :].set(mask_mean)
    slab = slab.at[OFF_MADD:OFF_MADD + G, :].set(mask_add)
    slab = slab.at[OFF_X:OFF_X + N, :].set(x_pad)
    return slab, (a_sum, a_mean, mask, inv_count, x_pad)


def model_reference(x_pad, a_sum, a_mean, mask, inv_count, p):
    """Pure-JAX reference with the original (unfused) parameter layout."""
    def sage(a, xv, wl, b, wr):
        out = (a @ xv) @ wl + b + xv @ wr
        return jnp.where(out >= 0, out, NEG_SLOPE * out)

    h = sage(a_sum, x_pad, p["w1_l"], p["b1"], p["w1_r"])
    h = sage(a_sum, h, p["w2_l"], p["b2"], p["w2_r"])
    h = sage(a_mean, h, p["w3_l"], p["b3"], p["w3_r"])
    mean = (mask @ h) * inv_count
    maxp = jnp.max(jnp.where(mask[:, :, None] > 0, h[None, :, :], -jnp.inf), axis=1)
    feat = jnp.concatenate([mean, 0.5 * maxp], axis=1)
    return feat @ p["w_fin"] + p["b_fin"]


if __name__ == "__main__":
    # B graph-batches, each: N=16 nodes, E=40 edges, 2 graphs of 8 nodes, hidden=32.
    B, E = 4, 40
    key = jax.random.PRNGKey(0)
    batch = jnp.concatenate([jnp.zeros((8,), jnp.int32), jnp.ones((8,), jnp.int32)])

    slabs, ref_inputs = [], []
    for _ in range(B):
        kx, ke, key = jax.random.split(key, 3)
        x = jax.random.normal(kx, (N, 1), jnp.float32)          # node features (N, 1)
        edge_index = jax.random.randint(ke, (2, E), 0, N)       # [src; dst]
        slab, aux = pack_graph_slab(x, edge_index, batch)
        slabs.append(slab)
        ref_inputs.append(aux)
    graph_slab = jnp.stack(slabs)                                # (B, G_ROWS, N)

    params = init_params()
    weight_slab = pack_weight_slab(params)                       # (W_ROWS, H)

    out = gnn_forward(graph_slab, weight_slab)
    out = jax.block_until_ready(out)
    assert out.shape == (B, G, 1)

    for b in range(B):
        a_sum, a_mean, mask, inv_count, x_pad = ref_inputs[b]
        ref = model_reference(x_pad, a_sum, a_mean, mask, inv_count, params)
        assert jnp.allclose(out[b], ref, atol=1e-4, rtol=1e-4), (b, out[b], ref)

    print("KERNEL_OK")
</pallas_src>

<mosaic_0001>
module attributes {stable_mosaic.version = 11 : i64} {
  func.func @_fused_gnn_kernel(%arg0: i32, %arg1: memref<1x64x16xf32, #tpu.memory_space<vmem>>, %arg2: memref<192x32xf32, #tpu.memory_space<vmem>>, %arg3: memref<1x2x1xf32, #tpu.memory_space<vmem>>) attributes {dimension_semantics = [#tpu.dimension_semantics<parallel>], iteration_bounds = array<i64: 4>, scalar_prefetch = 0 : i64, scratch_operands = 0 : i64, tpu.core_type = #tpu.core_type<tc>, window_params = [{transform_indices = @transform_0, window_bounds = array<i64: 1, 64, 16>}, {pipeline_mode = #tpu.pipeline_mode<synchronous>, transform_indices = @transform_1, window_bounds = array<i64: 192, 32>}, {transform_indices = @transform_2, window_bounds = array<i64: 1, 2, 1>}]} {
    %c0 = arith.constant 0 : index
    %c0_0 = arith.constant 0 : index
    %c0_1 = arith.constant 0 : index
    %0 = vector.load %arg1[%c0, %c0_0, %c0_1] : memref<1x64x16xf32, #tpu.memory_space<vmem>>, vector<1x16x16xf32>
    %1 = vector.shape_cast %0 : vector<1x16x16xf32> to vector<16x16xf32>
    %c0_2 = arith.constant 0 : index
    %c16 = arith.constant 16 : index
    %c0_3 = arith.constant 0 : index
    %2 = vector.load %arg1[%c0_2, %c16, %c0_3] : memref<1x64x16xf32, #tpu.memory_space<vmem>>, vector<1x16x16xf32>
    %3 = vector.shape_cast %2 : vector<1x16x16xf32> to vector<16x16xf32>
    %c0_4 = arith.constant 0 : index
    %c32 = arith.constant 32 : index
    %c0_5 = arith.constant 0 : index
    %4 = vector.load %arg1[%c0_4, %c32, %c0_5] : memref<1x64x16xf32, #tpu.memory_space<vmem>>, vector<1x2x16xf32>
    %5 = vector.shape_cast %4 : vector<1x2x16xf32> to vector<2x16xf32>
    %c0_6 = arith.constant 0 : index
    %c40 = arith.constant 40 : index
    %c0_7 = arith.constant 0 : index
    %6 = vector.load %arg1[%c0_6, %c40, %c0_7] : memref<1x64x16xf32, #tpu.memory_space<vmem>>, vector<1x2x16xf32>
    %7 = vector.shape_cast %6 : vector<1x2x16xf32> to vector<2x16xf32>
    %c0_8 = arith.constant 0 : index
    %c48 = arith.constant 48 : index
    %c0_9 = arith.constant 0 : index
    %8 = vector.load %arg1[%c0_8, %c48, %c0_9] : memref<1x64x16xf32, #tpu.memory_space<vmem>>, vector<1x16x16xf32>
    %9 = vector.shape_cast %8 : vector<1x16x16xf32> to vector<16x16xf32>
    %c0_10 = arith.constant 0 : index
    %c0_11 = arith.constant 0 : index
    %10 = vector.load %arg2[%c0_10, %c0_11] : memref<192x32xf32, #tpu.memory_space<vmem>>, vector<16x32xf32>
    %c16_12 = arith.constant 16 : index
    %c0_13 = arith.constant 0 : index
    %11 = vector.load %arg2[%c16_12, %c0_13] : memref<192x32xf32, #tpu.memory_space<vmem>>, vector<16x32xf32>
    %c32_14 = arith.constant 32 : index
    %c0_15 = arith.constant 0 : index
    %12 = vector.load %arg2[%c32_14, %c0_15] : memref<192x32xf32, #tpu.memory_space<vmem>>, vector<1x32xf32>
    %cst = arith.constant dense<0.000000e+00> : vector<16x16xf32>
    %13 = tpu.matmul %1, %9, %cst {dimension_numbers = #tpu.dot_dimension_numbers<[1], [0], [0], [1], [0, 0, 1, 1], [], []>} : vector<16x16xf32>, vector<16x16xf32>, vector<16x16xf32> -> vector<16x16xf32>
    %cst_16 = arith.constant dense<0.000000e+00> : vector<16x32xf32>
    %14 = tpu.matmul %13, %10, %cst_16 {dimension_numbers = #tpu.dot_dimension_numbers<[1], [0], [0], [1], [0, 0, 1, 1], [], []>} : vector<16x16xf32>, vector<16x32xf32>, vector<16x32xf32> -> vector<16x32xf32>
    %cst_17 = arith.constant dense<0.000000e+00> : vector<16x32xf32>
    %15 = tpu.matmul %9, %11, %cst_17 {dimension_numbers = #tpu.dot_dimension_numbers<[1], [0], [0], [1], [0, 0, 1, 1], [], []>} : vector<16x16xf32>, vector<16x32xf32>, vector<16x32xf32> -> vector<16x32xf32>
    %16 = arith.addf %14, %15 : vector<16x32xf32>
    %17 = vector.broadcast %12 : vector<1x32xf32> to vector<16x32xf32>
    %18 = arith.addf %16, %17 : vector<16x32xf32>
    %cst_18 = arith.constant 0.00999999977 : f32
    %19 = vector.broadcast %cst_18 : f32 to vector<16x32xf32>
    %20 = arith.mulf %19, %18 : vector<16x32xf32>
    %21 = arith.maximumf %18, %20 : vector<16x32xf32>
    %c40_19 = arith.constant 40 : index
    %c0_20 = arith.constant 0 : index
    %22 = vector.load %arg2[%c40_19, %c0_20] : memref<192x32xf32, #tpu.memory_space<vmem>>, vector<32x32xf32>
    %c72 = arith.constant 72 : index
    %c0_21 = arith.constant 0 : index
    %23 = vector.load %arg2[%c72, %c0_21] : memref<192x32xf32, #tpu.memory_space<vmem>>, vector<32x32xf32>
    %c104 = arith.constant 104 : index
    %c0_22 = arith.constant 0 : index
    %24 = vector.load %arg2[%c104, %c0_22] : memref<192x32xf32, #tpu.memory_space<vmem>>, vector<1x32xf32>
    %cst_23 = arith.constant dense<0.000000e+00> : vector<16x32xf32>
    %25 = tpu.matmul %1, %21, %cst_23 {dimension_numbers = #tpu.dot_dimension_numbers<[1], [0], [0], [1], [0, 0, 1, 1], [], []>} : vector<16x16xf32>, vector<16x32xf32>, vector<16x32xf32> -> vector<16x32xf32>
    %cst_24 = arith.constant dense<0.000000e+00> : vector<16x32xf32>
    %26 = tpu.matmul %25, %22, %cst_24 {dimension_numbers = #tpu.dot_dimension_numbers<[1], [0], [0], [1], [0, 0, 1, 1], [], []>} : vector<16x32xf32>, vector<32x32xf32>, vector<16x32xf32> -> vector<16x32xf32>
    %cst_25 = arith.constant dense<0.000000e+00> : vector<16x32xf32>
    %27 = tpu.matmul %21, %23, %cst_25 {dimension_numbers = #tpu.dot_dimension_numbers<[1], [0], [0], [1], [0, 0, 1, 1], [], []>} : vector<16x32xf32>, vector<32x32xf32>, vector<16x32xf32> -> vector<16x32xf32>
    %28 = arith.addf %26, %27 : vector<16x32xf32>
    %29 = vector.broadcast %24 : vector<1x32xf32> to vector<16x32xf32>
    %30 = arith.addf %28, %29 : vector<16x32xf32>
    %cst_26 = arith.constant 0.00999999977 : f32
    %31 = vector.broadcast %cst_26 : f32 to vector<16x32xf32>
    %32 = arith.mulf %31, %30 : vector<16x32xf32>
    %33 = arith.maximumf %30, %32 : vector<16x32xf32>
    %c112 = arith.constant 112 : index
    %c0_27 = arith.constant 0 : index
    %34 = vector.load %arg2[%c112, %c0_27] : memref<192x32xf32, #tpu.memory_space<vmem>>, vector<32x32xf32>
    %c144 = arith.constant 144 : index
    %c0_28 = arith.constant 0 : index
    %35 = vector.load %arg2[%c144, %c0_28] : memref<192x32xf32, #tpu.memory_space<vmem>>, vector<32x32xf32>
    %c176 = arith.constant 176 : index
    %c0_29 = arith.constant 0 : index
    %36 = vector.load %arg2[%c176, %c0_29] : memref<192x32xf32, #tpu.memory_space<vmem>>, vector<1x32xf32>
    %cst_30 = arith.constant dense<0.000000e+00> : vector<16x32xf32>
    %37 = tpu.matmul %3, %33, %cst_30 {dimension_numbers = #tpu.dot_dimension_numbers<[1], [0], [0], [1], [0, 0, 1, 1], [], []>} : vector<16x16xf32>, vector<16x32xf32>, vector<16x32xf32> -> vector<16x32xf32>
    %cst_31 = arith.constant dense<0.000000e+00> : vector<16x32xf32>
    %38 = tpu.matmul %37, %34, %cst_31 {dimension_numbers = #tpu.dot_dimension_numbers<[1], [0], [0], [1], [0, 0, 1, 1], [], []>} : vector<16x32xf32>, vector<32x32xf32>, vector<16x32xf32> -> vector<16x32xf32>
    %cst_32 = arith.constant dense<0.000000e+00> : vector<16x32xf32>
    %39 = tpu.matmul %33, %35, %cst_32 {dimension_numbers = #tpu.dot_dimension_numbers<[1], [0], [0], [1], [0, 0, 1, 1], [], []>} : vector<16x32xf32>, vector<32x32xf32>, vector<16x32xf32> -> vector<16x32xf32>
    %40 = arith.addf %38, %39 : vector<16x32xf32>
    %41 = vector.broadcast %36 : vector<1x32xf32> to vector<16x32xf32>
    %42 = arith.addf %40, %41 : vector<16x32xf32>
    %cst_33 = arith.constant 0.00999999977 : f32
    %43 = vector.broadcast %cst_33 : f32 to vector<16x32xf32>
    %44 = arith.mulf %43, %42 : vector<16x32xf32>
    %45 = arith.maximumf %42, %44 : vector<16x32xf32>
    %cst_34 = arith.constant dense<0.000000e+00> : vector<2x32xf32>
    %46 = tpu.matmul %5, %45, %cst_34 {dimension_numbers = #tpu.dot_dimension_numbers<[1], [0], [0], [1], [0, 0, 1, 1], [], []>} : vector<2x16xf32>, vector<16x32xf32>, vector<2x32xf32> -> vector<2x32xf32>
    %47 = vector.shape_cast %45 : vector<16x32xf32> to vector<1x16x32xf32>
    %48 = vector.shape_cast %7 : vector<2x16xf32> to vector<2x16x1xf32>
    %49 = vector.broadcast %47 : vector<1x16x32xf32> to vector<2x16x32xf32>
    %50 = vector.broadcast %48 : vector<2x16x1xf32> to vector<2x16x32xf32>
    %51 = arith.addf %49, %50 : vector<2x16x32xf32>
    %cst_35 = arith.constant dense<0xFF800000> : vector<2x32xf32>
    %52 = vector.multi_reduction <maximumf>, %51, %cst_35 [1] : vector<2x16x32xf32> to vector<2x32xf32>
    %c184 = arith.constant 184 : index
    %c0_36 = arith.constant 0 : index
    %53 = vector.load %arg2[%c184, %c0_36] : memref<192x32xf32, #tpu.memory_space<vmem>>, vector<8x32xf32>
    %54 = vector.extract_strided_slice %53 {offsets = [0, 0], sizes = [1, 32], strides = [1, 1]} : vector<8x32xf32> to vector<1x32xf32>
    %55 = vector.extract_strided_slice %53 {offsets = [1, 0], sizes = [1, 32], strides = [1, 1]} : vector<8x32xf32> to vector<1x32xf32>
    %56 = vector.extract_strided_slice %53 {offsets = [2, 0], sizes = [1, 1], strides = [1, 1]} : vector<8x32xf32> to vector<1x1xf32>
    %57 = vector.broadcast %54 : vector<1x32xf32> to vector<2x32xf32>
    %58 = arith.mulf %46, %57 : vector<2x32xf32>
    %59 = vector.broadcast %55 : vector<1x32xf32> to vector<2x32xf32>
    %60 = arith.mulf %52, %59 : vector<2x32xf32>
    %61 = arith.addf %58, %60 : vector<2x32xf32>
    %cst_37 = arith.constant dense<0.000000e+00> : vector<2xf32>
    %62 = vector.multi_reduction <add>, %61, %cst_37 [1] : vector<2x32xf32> to vector<2xf32>
    %63 = vector.shape_cast %62 : vector<2xf32> to vector<2x1xf32>
    %64 = vector.broadcast %56 : vector<1x1xf32> to vector<2x1xf32>
    %65 = arith.addf %63, %64 : vector<2x1xf32>
    %c0_38 = arith.constant 0 : index
    %c0_39 = arith.constant 0 : index
    %c0_40 = arith.constant 0 : index
    %66 = vector.load %arg3[%c0_38, %c0_39, %c0_40] : memref<1x2x1xf32, #tpu.memory_space<vmem>>, vector<1x2x1xf32>
    %67 = vector.shape_cast %66 : vector<1x2x1xf32> to vector<2x1xf32>
    %68 = vector.shape_cast %65 : vector<2x1xf32> to vector<1x2x1xf32>
    tpu.vector_store %arg3[%c0_38, %c0_39, %c0_40], %68 {strides = array<i32>} : memref<1x2x1xf32, #tpu.memory_space<vmem>>, vector<1x2x1xf32>,
    return
  }
  func.func @transform_0(%arg0: i32) -> (i32, i32, i32) {
    %c0_i32 = arith.constant 0 : i32
    %c0_i32_0 = arith.constant 0 : i32
    %c0_i32_1 = arith.constant 0 : i32
    return %arg0, %c0_i32, %c0_i32_0 : i32, i32, i32
  }
  func.func @transform_1(%arg0: i32) -> (i32, i32) {
    %c0_i32 = arith.constant 0 : i32
    %c0_i32_0 = arith.constant 0 : i32
    %c0_i32_1 = arith.constant 0 : i32
    return %c0_i32, %c0_i32_0 : i32, i32
  }
  func.func @transform_2(%arg0: i32) -> (i32, i32, i32) {
    %c0_i32 = arith.constant 0 : i32
    %c0_i32_0 = arith.constant 0 : i32
    %c0_i32_1 = arith.constant 0 : i32
    return %arg0, %c0_i32, %c0_i32_0 : i32, i32, i32
  }
}

</mosaic_0001>

<llo_original>
// kernel: tpu_custom_call.1
$region0: #{tpu_custom_call.1}
  #allocation0 [shape = 'u32[]', space=smem, size = 0x4, offset = 0x4, fixed_abs, tag = 'smem constant byte address 0x4 - core index']
  #allocation1 [shape = 'u32[144,128]{1,0:T(1,128)}', space=vmem, size = 0x12000, scoped, tag = 'internal scratch']
  %s0 = inlined_call_operand.vmem [shape: f32[4,64,16], index: 0, kind: input, shape index: {}]
  %s1 = inlined_call_operand.vmem [shape: f32[192,32], index: 1, kind: input, shape index: {}]
  %s2 = inlined_call_operand.vmem [shape: f32[4,2,1], index: 2, kind: output, shape index: {}]
  %s3 = sld [smem:[#allocation0]]
  $region41: #{tpu_custom_call.1} parent=0
    _
  %s5 = ssub.s32 1, %s3
  %s6 = scalar_select 0, %s5, %s3
  loop: start=0, step=1, limit=6
  $region2: #{tpu_custom_call.1} parent=0 // loop_pre_header
    _
  $region3: #{tpu_custom_call.1} parent=0 // loop_header
    %s8 = sphi 0, %s12
    %p9 = scmp.ge.s32.totalorder %s8, 6
    %s18 = sphi 0, %s20
    %s21 = sphi 0, %s18
    %s22 = sphi 0, %s21
    %s38 = sphi 0, %s22
    %s42 = sphi 0, %s42
    %s44 = sphi 0, %s42
    %s45 = sphi 0, %s44
    %s59 = sphi 0, %s45
    %s65 = sphi 0, %s67
    %s68 = sphi 0, %s65
    %s69 = sphi 0, %s68
    %s85 = sphi 0, %s69
  $region4: #{tpu_custom_call.1} parent=0 // loop_header_branch
    %11 = sbr.rel (%p9) target = $region8
  $region5: #{tpu_custom_call.1} parent=0 // loop_body
    %s13 = ssub.s32 %s8, 1
    %s14 = ssub.s32 %s8, 2
    %s15 = sadd.s32 %s8, 1
    %s16 = ssub.s32 %s8, %s15
    %p17 = scmp.eq.s32.totalorder %s16, 0
    %s19 = sadd.s32 %s18, 1
    %s20 = scalar_select %p17, %s18, %s19
    %p23 = pneg %p17
    %p24 = scmp.eq.s32.totalorder %s8, 3
    %p25 = por %p23, %p24
    %p26 = scmp.ne.s32.totalorder %s18, %s21
    %p27 = scmp.eq.s32.totalorder %s8, 0
    %p28 = por %p26, %p27
    %p29 = scmp.ne.s32.totalorder %s18, %s21
    %p30 = scmp.eq.s32.totalorder %s13, 3
    %p31 = por %p29, %p30
    %p32 = scmp.ne.s32.totalorder %s21, %s22
    %p33 = scmp.eq.s32.totalorder %s13, 0
    %p34 = por %p32, %p33
    %p35 = scmp.ne.s32.totalorder %s21, %s22
    %p36 = scmp.eq.s32.totalorder %s14, 3
    %p37 = por %p35, %p36
    %p39 = scmp.ne.s32.totalorder %s22, %s38
    %p40 = scmp.eq.s32.totalorder %s14, 0
    %p41 = por %p39, %p40
    %s43 = sadd.s32 %s42, 1
    %p46 = scmp.eq.s32.totalorder %s8, 3
    %p47 = scmp.ne.s32.totalorder %s42, %s44
    %p48 = scmp.eq.s32.totalorder %s8, 0
    %p49 = por %p47, %p48
    %p50 = scmp.ne.s32.totalorder %s42, %s44
    %p51 = scmp.eq.s32.totalorder %s13, 3
    %p52 = por %p50, %p51
    %p53 = scmp.ne.s32.totalorder %s44, %s45
    %p54 = scmp.eq.s32.totalorder %s13, 0
    %p55 = por %p53, %p54
    %p56 = scmp.ne.s32.totalorder %s44, %s45
    %p57 = scmp.eq.s32.totalorder %s14, 3
    %p58 = por %p56, %p57
    %p60 = scmp.ne.s32.totalorder %s45, %s59
    %p61 = scmp.eq.s32.totalorder %s14, 0
    %p62 = por %p60, %p61
    %s63 = ssub.s32 %s8, %s15
    %p64 = scmp.eq.s32.totalorder %s63, 0
    %s66 = sadd.s32 %s65, 1
    %s67 = scalar_select %p64, %s65, %s66
    %p70 = pneg %p64
    %p71 = scmp.eq.s32.totalorder %s8, 3
    %p72 = por %p70, %p71
    %p73 = scmp.ne.s32.totalorder %s65, %s68
    %p74 = scmp.eq.s32.totalorder %s8, 0
    %p75 = por %p73, %p74
    %p76 = scmp.ne.s32.totalorder %s65, %s68
    %p77 = scmp.eq.s32.totalorder %s13, 3
    %p78 = por %p76, %p77
    %p79 = scmp.ne.s32.totalorder %s68, %s69
    %p80 = scmp.eq.s32.totalorder %s13, 0
    %p81 = por %p79, %p80
    %p82 = scmp.ne.s32.totalorder %s68, %s69
    %p83 = scmp.eq.s32.totalorder %s14, 3
    %p84 = por %p82, %p83
    %p86 = scmp.ne.s32.totalorder %s69, %s85
    %p87 = scmp.eq.s32.totalorder %s14, 0
    %p88 = por %p86, %p87
    %p89 = scmp.le.s32.totalorder 1, %s8
    %p90 = scmp.lt.s32.totalorder %s8, 5
    %p91 = pnand %p89, %p90
    %p92 = pneg %p91
    // Predicated region
    $region9: #{tpu_custom_call.1} parent=5 // pred_check
      _
    $region10: #{tpu_custom_call.1} parent=5 // pred_check_branch
      %94 = sbr.rel (%p91) target = $region12
    $region11: #{tpu_custom_call.1} parent=5 // pred_region
      %s95 = ssub.s32 %s8, 1
      // Predicated region
      $region13: #{tpu_custom_call.1} parent=11 // pred_check
        %p96 = pneg %p55
      $region14: #{tpu_custom_call.1} parent=11 // pred_check_branch
        %98 = sbr.rel (%p96) target = $region16
      $region15: #{tpu_custom_call.1} parent=11 // pred_region
        _
      $region16: #{tpu_custom_call.1} parent=11 // pred_fallthru
        _
    $region12: #{tpu_custom_call.1} parent=5 // pred_fallthru
      _
    %p99 = scmp.lt.s32.totalorder %s8, 4
    // Predicated region
    $region17: #{tpu_custom_call.1} parent=5 // pred_check
      %p100 = pneg %p99
    $region18: #{tpu_custom_call.1} parent=5 // pred_check_branch
      %102 = sbr.rel (%p100) target = $region20
    $region19: #{tpu_custom_call.1} parent=5 // pred_region
      // Predicated region
      $region21: #{tpu_custom_call.1} parent=19 // pred_check
        %p103 = pneg %p28
      $region22: #{tpu_custom_call.1} parent=19 // pred_check_branch
        %105 = sbr.rel (%p103) target = $region24
      $region23: #{tpu_custom_call.1} parent=19 // pred_region
        %p106 = scmp.lt.s32.totalorder %s8, 3
        %s107 = scalar_select %p106, %s8, 3
        %s108 = smul.addr %s107, 8
        %s109 = smul.addr %s108, 8
        %s110 = scalar_lea.vmem %s0, %s109
      $region24: #{tpu_custom_call.1} parent=19 // pred_fallthru
        _
    $region20: #{tpu_custom_call.1} parent=5 // pred_fallthru
      _
    %p111 = scmp.le.s32.totalorder 1, %s8
    %p112 = scmp.lt.s32.totalorder %s8, 5
    %p113 = pnand %p111, %p112
    %p114 = pneg %p113
    // Predicated region
    $region25: #{tpu_custom_call.1} parent=5 // pred_check
      _
    $region26: #{tpu_custom_call.1} parent=5 // pred_check_branch
      %116 = sbr.rel (%p113) target = $region28
    $region27: #{tpu_custom_call.1} parent=5 // pred_region
      %s117 = ssub.s32 %s8, 1
      %p118 = scmp.lt.s32.totalorder %s13, 3
      %s119 = scalar_select %p118, %s13, 3
      %s120 = smul.addr %s119, 8
      %s121 = smul.addr %s120, 8
      %s122 = scalar_lea.vmem %s0, %s121
      %p123 = pneg %p34
      %p124 = pneg %p31
      %p125 = pneg %p55
      %p126 = pneg %p52
      %p127 = pneg %p81
      %p128 = pneg %p78
      %p129 = scmp.lt.s32.totalorder %s13, 3
      %s130 = scalar_select %p129, %s13, 3
      %s131 = smul.addr %s130, 2
      %s132 = scalar_lea.vmem %s2, %s131
      %p133 = scmp.lt.s32.totalorder %s13, 3
      %s134 = scalar_select %p133, %s13, 3
      %s135 = smul.addr %s134, 8
      %s136 = smul.addr %s135, 8
      %s137 = scalar_lea.vmem %s0, %s136
      %p138 = scmp.lt.s32.totalorder %s13, 3
      %s139 = scalar_select %p138, %s13, 3
      %s140 = smul.addr %s139, 2
      %s141 = scalar_lea.vmem %s2, %s140
      %v142 = vld [vmem:[%s137] sm:$0xff]
      %v143 = vld [vmem:[%s137 + $0x8] sm:$0xff]
      %v144 = vld [vmem:[%s137 + $0x10] sm:$0xff]
      %v145 = vld [vmem:[%s137 + $0x18] sm:$0xff]
      %v146 = vld [vmem:[%s137 + $0x20] sm:$0x3]
      %v147 = vld [vmem:[%s137 + $0x28] sm:$0x3]
      %v148 = vld [vmem:[%s137 + $0x30] sm:$0xff]
      %v149 = vld [vmem:[%s137 + $0x38] sm:$0xff]
      %v150 = vld [vmem:[%s1] sm:$0xff]
      %v151 = vld [vmem:[%s1 + $0x8] sm:$0xff]
      %v152 = vld [vmem:[%s1 + $0x10] sm:$0xff]
      %v153 = vld [vmem:[%s1 + $0x18] sm:$0xff]
      %v154 = vld [vmem:[%s1 + $0x20] sm:$0x1]
      %vm155 = vcmask 130048
      %v157 = vsel %vm155, %v142, 0
      %v160 = vsel %vm155, %v143, 0
      %162 = vmatprep.subr.mxu0 0.0
      %163 = vmatpush1.msra.mxu0 %v148
      %164 = vmatprep.subr.mxu0 0.0
      %165 = vmatpush1.msra.mxu0 %v149
      %166 = vmatprep.subr.mxu0 0.0
      %167 = vmatpush1.msra.mxu0 0.0
      %168 = vmatprep.subr.mxu0 0.0
      %169 = vmatpush1.msra.mxu0 0.0
      %170 = vmatprep.subr.mxu0 0.0
      %171 = vmatpush1.msra.mxu0 0.0
      %172 = vmatprep.subr.mxu0 0.0
      %173 = vmatpush1.msra.mxu0 0.0
      %174 = vmatprep.subr.mxu0 0.0
      %175 = vmatpush1.msra.mxu0 0.0
      %176 = vmatprep.subr.mxu0 0.0
      %177 = vmatpush1.msra.mxu0 0.0
      %178 = vmatprep.subr.mxu0 0.0
      %179 = vmatpush1.msra.mxu0 0.0
      %180 = vmatprep.subr.mxu0 0.0
      %181 = vmatpush1.msra.mxu0 0.0
      %182 = vmatprep.subr.mxu0 0.0
      %183 = vmatpush1.msra.mxu0 0.0
      %184 = vmatprep.subr.mxu0 0.0
      %185 = vmatpush1.msra.mxu0 0.0
      %186 = vmatprep.subr.mxu0 0.0
      %187 = vmatpush1.msra.mxu0 0.0
      %188 = vmatprep.subr.mxu0 0.0
      %189 = vmatpush1.msra.mxu0 0.0
      %190 = vmatprep.subr.mxu0 0.0
      %191 = vmatpush1.msra.mxu0 0.0
      %192 = vmatprep.subr.mxu0 0.0
      %193 = vmatpush1.msra.mxu0 0.0
      %194 = vmatprep.subr.mxu0 0.0
      %195 = vmatpush1.msra.mxu0 0.0
      %196 = vmatprep.subr.mxu0 0.0
      %197 = vmatpush1.msra.mxu0 0.0
      %198 = vmatprep.subr.mxu0 0.0
      %199 = vmatpush1.msra.mxu0 0.0
      %200 = vmatprep.subr.mxu0 0.0
      %201 = vmatpush1.msra.mxu0 0.0
      %202 = vmatprep.subr.mxu0 0.0
      %203 = vmatpush1.msra.mxu0 0.0
      %204 = vmatprep.subr.mxu0 0.0
      %205 = vmatpush1.msra.mxu0 0.0
      %206 = vmatprep.subr.mxu0 0.0
      %207 = vmatpush1.msra.mxu0 0.0
      %208 = vmatprep.subr.mxu0 0.0
      %209 = vmatpush1.msra.mxu0 0.0
      %210 = vmatprep.subr.mxu0 0.0
      %211 = vmatpush1.msra.mxu0 0.0
      %212 = vmatprep.subr.mxu0 0.0
      %213 = vmatpush1.msra.mxu0 0.0
      %214 = vmatprep.subr.mxu0 0.0
      %215 = vmatpush1.msra.mxu0 0.0
      %216 = vmatprep.subr.mxu0 0.0
      %217 = vmatpush1.msra.mxu0 0.0
      %218 = vmatprep.subr.mxu0 0.0
      %219 = vmatpush1.msra.mxu0 0.0
      %220 = vmatprep.subr.mxu0 0.0
      %221 = vmatpush1.msra.mxu0 0.0
      %222 = vmatprep.subr.mxu0 0.0
      %223 = vmatpush1.msra.mxu0 0.0
      %224 = vmatprep.subr.mxu0 0.0
      %225 = vmatpush1.msra.mxu0 0.0
      %226 = vmatprep.mubr.f32.mxu0 0.0
      %227 = vmatmul.mubr.f32.gmra.mrb[0].mxu0 %v157
      %v228 = vpop.f32.mrb[0].mxu0
      %v229 = vadd.f32 0.0, %v228
      %v230 = vpop.f32.mrb[0].mxu0
      %231 = vmatprep.mubr.f32.mxu0 0.0
      %232 = vmatmul.mubr.f32.gmra.mrb[0].mxu0 %v160
      %v233 = vpop.f32.mrb[0].mxu0
      %v234 = vadd.f32 0.0, %v233
      %v235 = vpop.f32.mrb[0].mxu0
      %236 = vdwg.mxu0
      %v238 = vsel %vm155, %v148, 0
      %v241 = vsel %vm155, %v149, 0
      %243 = vmatprep.subr.mxu0 0.0
      %244 = vmatpush1.msra.mxu0 %v152
      %245 = vmatprep.subr.mxu0 0.0
      %246 = vmatpush1.msra.mxu0 %v153
      %247 = vmatprep.subr.mxu0 0.0
      %248 = vmatpush1.msra.mxu0 0.0
      %249 = vmatprep.subr.mxu0 0.0
      %250 = vmatpush1.msra.mxu0 0.0
      %251 = vmatprep.subr.mxu0 0.0
      %252 = vmatpush1.msra.mxu0 0.0
      %253 = vmatprep.subr.mxu0 0.0
      %254 = vmatpush1.msra.mxu0 0.0
      %255 = vmatprep.subr.mxu0 0.0
      %256 = vmatpush1.msra.mxu0 0.0
      %257 = vmatprep.subr.mxu0 0.0
      %258 = vmatpush1.msra.mxu0 0.0
      %259 = vmatprep.subr.mxu0 0.0
      %260 = vmatpush1.msra.mxu0 0.0
      %261 = vmatprep.subr.mxu0 0.0
      %262 = vmatpush1.msra.mxu0 0.0
      %263 = vmatprep.subr.mxu0 0.0
      %264 = vmatpush1.msra.mxu0 0.0
      %265 = vmatprep.subr.mxu0 0.0
      %266 = vmatpush1.msra.mxu0 0.0
      %267 = vmatprep.subr.mxu0 0.0
      %268 = vmatpush1.msra.mxu0 0.0
      %269 = vmatprep.subr.mxu0 0.0
      %270 = vmatpush1.msra.mxu0 0.0
      %271 = vmatprep.subr.mxu0 0.0
      %272 = vmatpush1.msra.mxu0 0.0
      %273 = vmatprep.subr.mxu0 0.0
      %274 = vmatpush1.msra.mxu0 0.0
      %275 = vmatprep.subr.mxu0 0.0
      %276 = vmatpush1.msra.mxu0 0.0
      %277 = vmatprep.subr.mxu0 0.0
      %278 = vmatpush1.msra.mxu0 0.0
      %279 = vmatprep.subr.mxu0 0.0
      %280 = vmatpush1.msra.mxu0 0.0
      %281 = vmatprep.subr.mxu0 0.0
      %282 = vmatpush1.msra.mxu0 0.0
      %283 = vmatprep.subr.mxu0 0.0
      %284 = vmatpush1.msra.mxu0 0.0
      %285 = vmatprep.subr.mxu0 0.0
      %286 = vmatpush1.msra.mxu0 0.0
      %287 = vmatprep.subr.mxu0 0.0
      %288 = vmatpush1.msra.mxu0 0.0
      %289 = vmatprep.subr.mxu0 0.0
      %290 = vmatpush1.msra.mxu0 0.0
      %291 = vmatprep.subr.mxu0 0.0
      %292 = vmatpush1.msra.mxu0 0.0
      %293 = vmatprep.subr.mxu0 0.0
      %294 = vmatpush1.msra.mxu0 0.0
      %295 = vmatprep.subr.mxu0 0.0
      %296 = vmatpush1.msra.mxu0 0.0
      %297 = vmatprep.subr.mxu0 0.0
      %298 = vmatpush1.msra.mxu0 0.0
      %299 = vmatprep.subr.mxu0 0.0
      %300 = vmatpush1.msra.mxu0 0.0
      %301 = vmatprep.subr.mxu0 0.0
      %302 = vmatpush1.msra.mxu0 0.0
      %303 = vmatprep.subr.mxu0 0.0
      %304 = vmatpush1.msra.mxu0 0.0
      %305 = vmatprep.subr.mxu0 0.0
      %306 = vmatpush1.msra.mxu0 0.0
      %307 = vmatprep.mubr.f32.mxu0 0.0
      %308 = vmatmul.mubr.f32.gmra.mrb[0].mxu0 %v238
      %v309 = vpop.f32.mrb[0].mxu0
      %v310 = vadd.f32 0.0, %v309
      %v311 = vpop.f32.mrb[0].mxu0
      %312 = vmatprep.mubr.f32.mxu0 0.0
      %313 = vmatmul.mubr.f32.gmra.mrb[0].mxu0 %v241
      %v314 = vpop.f32.mrb[0].mxu0
      %v315 = vadd.f32 0.0, %v314
      %v316 = vpop.f32.mrb[0].mxu0
      %317 = vdwg.mxu0
      %v319 = vsel %vm155, %v229, 0
      %v322 = vsel %vm155, %v234, 0
      %324 = vmatprep.subr.mxu0 0.0
      %325 = vmatpush1.msra.mxu0 %v150
      %326 = vmatprep.subr.mxu0 0.0
      %327 = vmatpush1.msra.mxu0 %v151
      %328 = vmatprep.subr.mxu0 0.0
      %329 = vmatpush1.msra.mxu0 0.0
      %330 = vmatprep.subr.mxu0 0.0
      %331 = vmatpush1.msra.mxu0 0.0
      %332 = vmatprep.subr.mxu0 0.0
      %333 = vmatpush1.msra.mxu0 0.0
      %334 = vmatprep.subr.mxu0 0.0
      %335 = vmatpush1.msra.mxu0 0.0
      %336 = vmatprep.subr.mxu0 0.0
      %337 = vmatpush1.msra.mxu0 0.0
      %338 = vmatprep.subr.mxu0 0.0
      %339 = vmatpush1.msra.mxu0 0.0
      %340 = vmatprep.subr.mxu0 0.0
      %341 = vmatpush1.msra.mxu0 0.0
      %342 = vmatprep.subr.mxu0 0.0
      %343 = vmatpush1.msra.mxu0 0.0
      %344 = vmatprep.subr.mxu0 0.0
      %345 = vmatpush1.msra.mxu0 0.0
      %346 = vmatprep.subr.mxu0 0.0
      %347 = vmatpush1.msra.mxu0 0.0
      %348 = vmatprep.subr.mxu0 0.0
      %349 = vmatpush1.msra.mxu0 0.0
      %350 = vmatprep.subr.mxu0 0.0
      %351 = vmatpush1.msra.mxu0 0.0
      %352 = vmatprep.subr.mxu0 0.0
      %353 = vmatpush1.msra.mxu0 0.0
      %354 = vmatprep.subr.mxu0 0.0
      %355 = vmatpush1.msra.mxu0 0.0
      %356 = vmatprep.subr.mxu0 0.0
      %357 = vmatpush1.msra.mxu0 0.0
      %358 = vmatprep.subr.mxu0 0.0
      %359 = vmatpush1.msra.mxu0 0.0
      %360 = vmatprep.subr.mxu0 0.0
      %361 = vmatpush1.msra.mxu0 0.0
      %362 = vmatprep.subr.mxu0 0.0
      %363 = vmatpush1.msra.mxu0 0.0
      %364 = vmatprep.subr.mxu0 0.0
      %365 = vmatpush1.msra.mxu0 0.0
      %366 = vmatprep.subr.mxu0 0.0
      %367 = vmatpush1.msra.mxu0 0.0
      %368 = vmatprep.subr.mxu0 0.0
      %369 = vmatpush1.msra.mxu0 0.0
      %370 = vmatprep.subr.mxu0 0.0
      %371 = vmatpush1.msra.mxu0 0.0
      %372 = vmatprep.subr.mxu0 0.0
      %373 = vmatpush1.msra.mxu0 0.0
      %374 = vmatprep.subr.mxu0 0.0
      %375 = vmatpush1.msra.mxu0 0.0
      %376 = vmatprep.subr.mxu0 0.0
      %377 = vmatpush1.msra.mxu0 0.0
      %378 = vmatprep.subr.mxu0 0.0
      %379 = vmatpush1.msra.mxu0 0.0
      %380 = vmatprep.subr.mxu0 0.0
      %381 = vmatpush1.msra.mxu0 0.0
      %382 = vmatprep.subr.mxu0 0.0
      %383 = vmatpush1.msra.mxu0 0.0
      %384 = vmatprep.subr.mxu0 0.0
      %385 = vmatpush1.msra.mxu0 0.0
      %386 = vmatprep.subr.mxu0 0.0
      %387 = vmatpush1.msra.mxu0 0.0
      %388 = vmatprep.mubr.f32.mxu0 0.0
      %389 = vmatmul.mubr.f32.gmra.mrb[0].mxu0 %v319
      %v390 = vpop.f32.mrb[0].mxu0
      %v391 = vadd.f32 %v310, %v390
      %v392 = vpop.f32.mrb[0].mxu0
      %393 = vmatprep.mubr.f32.mxu0 0.0
      %394 = vmatmul.mubr.f32.gmra.mrb[0].mxu0 %v322
      %v395 = vpop.f32.mrb[0].mxu0
      %v396 = vadd.f32 %v315, %v395
      %v397 = vpop.f32.mrb[0].mxu0
      %398 = vdwg.mxu0
      %v399 = vlaneseq
      %v400 = vshrl.u32 %v399, 7
      %v401 = vsub.s32 0, %v400
      %v402 = vrot.slane %v154, %v401
      %v403 = vadd.f32 %v391, %v402
      %v404 = vadd.f32 %v396, %v402
      %v405 = vmul.f32 %v403, 0.01
      %v406 = vmul.f32 %v404, 0.01
      %v407 = vmax.f32 %v403, %v405
      %v408 = vmax.f32 %v404, %v406
      %v409 = vld [vmem:[%s1 + $0x28] sm:$0xff]
      %v410 = vld [vmem:[%s1 + $0x30] sm:$0xff]
      %v411 = vld [vmem:[%s1 + $0x38] sm:$0xff]
      %v412 = vld [vmem:[%s1 + $0x40] sm:$0xff]
      %v413 = vld [vmem:[%s1 + $0x48] sm:$0xff]
      %v414 = vld [vmem:[%s1 + $0x50] sm:$0xff]
      %v415 = vld [vmem:[%s1 + $0x58] sm:$0xff]
      %v416 = vld [vmem:[%s1 + $0x60] sm:$0xff]
      %v417 = vld [vmem:[%s1 + $0x68] sm:$0x1]
      %418 = vmatprep.subr.mxu0 0.0
      %419 = vmatpush1.msra.mxu0 %v407
      %420 = vmatprep.subr.mxu0 0.0
      %421 = vmatpush1.msra.mxu0 %v408
      %422 = vmatprep.subr.mxu0 0.0
      %423 = vmatpush1.msra.mxu0 0.0
      %424 = vmatprep.subr.mxu0 0.0
      %425 = vmatpush1.msra.mxu0 0.0
      %426 = vmatprep.subr.mxu0 0.0
      %427 = vmatpush1.msra.mxu0 0.0
      %428 = vmatprep.subr.mxu0 0.0
      %429 = vmatpush1.msra.mxu0 0.0
      %430 = vmatprep.subr.mxu0 0.0
      %431 = vmatpush1.msra.mxu0 0.0
      %432 = vmatprep.subr.mxu0 0.0
      %433 = vmatpush1.msra.mxu0 0.0
      %434 = vmatprep.subr.mxu0 0.0
      %435 = vmatpush1.msra.mxu0 0.0
      %436 = vmatprep.subr.mxu0 0.0
      %437 = vmatpush1.msra.mxu0 0.0
      %438 = vmatprep.subr.mxu0 0.0
      %439 = vmatpush1.msra.mxu0 0.0
      %440 = vmatprep.subr.mxu0 0.0
      %441 = vmatpush1.msra.mxu0 0.0
      %442 = vmatprep.subr.mxu0 0.0
      %443 = vmatpush1.msra.mxu0 0.0
      %444 = vmatprep.subr.mxu0 0.0
      %445 = vmatpush1.msra.mxu0 0.0
      %446 = vmatprep.subr.mxu0 0.0
      %447 = vmatpush1.msra.mxu0 0.0
      %448 = vmatprep.subr.mxu0 0.0
      %449 = vmatpush1.msra.mxu0 0.0
      %450 = vmatprep.subr.mxu0 0.0
      %451 = vmatpush1.msra.mxu0 0.0
      %452 = vmatprep.subr.mxu0 0.0
      %453 = vmatpush1.msra.mxu0 0.0
      %454 = vmatprep.subr.mxu0 0.0
      %455 = vmatpush1.msra.mxu0 0.0
      %456 = vmatprep.subr.mxu0 0.0
      %457 = vmatpush1.msra.mxu0 0.0
      %458 = vmatprep.subr.mxu0 0.0
      %459 = vmatpush1.msra.mxu0 0.0
      %460 = vmatprep.subr.mxu0 0.0
      %461 = vmatpush1.msra.mxu0 0.0
      %462 = vmatprep.subr.mxu0 0.0
      %463 = vmatpush1.msra.mxu0 0.0
      %464 = vmatprep.subr.mxu0 0.0
      %465 = vmatpush1.msra.mxu0 0.0
      %466 = vmatprep.subr.mxu0 0.0
      %467 = vmatpush1.msra.mxu0 0.0
      %468 = vmatprep.subr.mxu0 0.0
      %469 = vmatpush1.msra.mxu0 0.0
      %470 = vmatprep.subr.mxu0 0.0
      %471 = vmatpush1.msra.mxu0 0.0
      %472 = vmatprep.subr.mxu0 0.0
      %473 = vmatpush1.msra.mxu0 0.0
      %474 = vmatprep.subr.mxu0 0.0
      %475 = vmatpush1.msra.mxu0 0.0
      %476 = vmatprep.subr.mxu0 0.0
      %477 = vmatpush1.msra.mxu0 0.0
      %478 = vmatprep.subr.mxu0 0.0
      %479 = vmatpush1.msra.mxu0 0.0
      %480 = vmatprep.subr.mxu0 0.0
      %481 = vmatpush1.msra.mxu0 0.0
      %482 = vmatprep.mubr.f32.mxu0 0.0
      %483 = vmatmul.mubr.f32.gmra.mrb[0].mxu0 %v157
      %v484 = vpop.f32.mrb[0].mxu0
      %v485 = vadd.f32 0.0, %v484
      %v486 = vpop.f32.mrb[0].mxu0
      %487 = vmatprep.mubr.f32.mxu0 0.0
      %488 = vmatmul.mubr.f32.gmra.mrb[0].mxu0 %v160
      %v489 = vpop.f32.mrb[0].mxu0
      %v490 = vadd.f32 0.0, %v489
      %v491 = vpop.f32.mrb[0].mxu0
      %492 = vdwg.mxu0
      %vm493 = vcmask 261120
      %v495 = vsel %vm493, %v407, 0
      %v498 = vsel %vm493, %v408, 0
      %500 = vmatprep.subr.mxu0 0.0
      %501 = vmatpush1.msra.mxu0 %v413
      %502 = vmatprep.subr.mxu0 0.0
      %503 = vmatpush1.msra.mxu0 %v414
      %504 = vmatprep.subr.mxu0 0.0
      %505 = vmatpush1.msra.mxu0 %v415
      %506 = vmatprep.subr.mxu0 0.0
      %507 = vmatpush1.msra.mxu0 %v416
      %508 = vmatprep.subr.mxu0 0.0
      %509 = vmatpush1.msra.mxu0 0.0
      %510 = vmatprep.subr.mxu0 0.0
      %511 = vmatpush1.msra.mxu0 0.0
      %512 = vmatprep.subr.mxu0 0.0
      %513 = vmatpush1.msra.mxu0 0.0
      %514 = vmatprep.subr.mxu0 0.0
      %515 = vmatpush1.msra.mxu0 0.0
      %516 = vmatprep.subr.mxu0 0.0
      %517 = vmatpush1.msra.mxu0 0.0
      %518 = vmatprep.subr.mxu0 0.0
      %519 = vmatpush1.msra.mxu0 0.0
      %520 = vmatprep.subr.mxu0 0.0
      %521 = vmatpush1.msra.mxu0 0.0
      %522 = vmatprep.subr.mxu0 0.0
      %523 = vmatpush1.msra.mxu0 0.0
      %524 = vmatprep.subr.mxu0 0.0
      %525 = vmatpush1.msra.mxu0 0.0
      %526 = vmatprep.subr.mxu0 0.0
      %527 = vmatpush1.msra.mxu0 0.0
      %528 = vmatprep.subr.mxu0 0.0
      %529 = vmatpush1.msra.mxu0 0.0
      %530 = vmatprep.subr.mxu0 0.0
      %531 = vmatpush1.msra.mxu0 0.0
      %532 = vmatprep.subr.mxu0 0.0
      %533 = vmatpush1.msra.mxu0 0.0
      %534 = vmatprep.subr.mxu0 0.0
      %535 = vmatpush1.msra.mxu0 0.0
      %536 = vmatprep.subr.mxu0 0.0
      %537 = vmatpush1.msra.mxu0 0.0
      %538 = vmatprep.subr.mxu0 0.0
      %539 = vmatpush1.msra.mxu0 0.0
      %540 = vmatprep.subr.mxu0 0.0
      %541 = vmatpush1.msra.mxu0 0.0
      %542 = vmatprep.subr.mxu0 0.0
      %543 = vmatpush1.msra.mxu0 0.0
      %544 = vmatprep.subr.mxu0 0.0
      %545 = vmatpush1.msra.mxu0 0.0
      %546 = vmatprep.subr.mxu0 0.0
      %547 = vmatpush1.msra.mxu0 0.0
      %548 = vmatprep.subr.mxu0 0.0
      %549 = vmatpush1.msra.mxu0 0.0
      %550 = vmatprep.subr.mxu0 0.0
      %551 = vmatpush1.msra.mxu0 0.0
      %552 = vmatprep.subr.mxu0 0.0
      %553 = vmatpush1.msra.mxu0 0.0
      %554 = vmatprep.subr.mxu0 0.0
      %555 = vmatpush1.msra.mxu0 0.0
      %556 = vmatprep.subr.mxu0 0.0
      %557 = vmatpush1.msra.mxu0 0.0
      %558 = vmatprep.subr.mxu0 0.0
      %559 = vmatpush1.msra.mxu0 0.0
      %560 = vmatprep.subr.mxu0 0.0
      %561 = vmatpush1.msra.mxu0 0.0
      %562 = vmatprep.subr.mxu0 0.0
      %563 = vmatpush1.msra.mxu0 0.0
      %564 = vmatprep.mubr.f32.mxu0 0.0
      %565 = vmatmul.mubr.f32.gmra.mrb[0].mxu0 %v495
      %v566 = vpop.f32.mrb[0].mxu0
      %v567 = vadd.f32 0.0, %v566
      %v568 = vpop.f32.mrb[0].mxu0
      %569 = vmatprep.mubr.f32.mxu0 0.0
      %570 = vmatmul.mubr.f32.gmra.mrb[0].mxu0 %v498
      %v571 = vpop.f32.mrb[0].mxu0
      %v572 = vadd.f32 0.0, %v571
      %v573 = vpop.f32.mrb[0].mxu0
      %574 = vdwg.mxu0
      %v576 = vsel %vm493, %v485, 0
      %v579 = vsel %vm493, %v490, 0
      %581 = vmatprep.subr.mxu0 0.0
      %582 = vmatpush1.msra.mxu0 %v409
      %583 = vmatprep.subr.mxu0 0.0
      %584 = vmatpush1.msra.mxu0 %v410
      %585 = vmatprep.subr.mxu0 0.0
      %586 = vmatpush1.msra.mxu0 %v411
      %587 = vmatprep.subr.mxu0 0.0
      %588 = vmatpush1.msra.mxu0 %v412
      %589 = vmatprep.subr.mxu0 0.0
      %590 = vmatpush1.msra.mxu0 0.0
      %591 = vmatprep.subr.mxu0 0.0
      %592 = vmatpush1.msra.mxu0 0.0
      %593 = vmatprep.subr.mxu0 0.0
      %594 = vmatpush1.msra.mxu0 0.0
      %595 = vmatprep.subr.mxu0 0.0
      %596 = vmatpush1.msra.mxu0 0.0
      %597 = vmatprep.subr.mxu0 0.0
      %598 = vmatpush1.msra.mxu0 0.0
      %599 = vmatprep.subr.mxu0 0.0
      %600 = vmatpush1.msra.mxu0 0.0
      %601 = vmatprep.subr.mxu0 0.0
      %602 = vmatpush1.msra.mxu0 0.0
      %603 = vmatprep.subr.mxu0 0.0
      %604 = vmatpush1.msra.mxu0 0.0
      %605 = vmatprep.subr.mxu0 0.0
      %606 = vmatpush1.msra.mxu0 0.0
      %607 = vmatprep.subr.mxu0 0.0
      %608 = vmatpush1.msra.mxu0 0.0
      %609 = vmatprep.subr.mxu0 0.0
      %610 = vmatpush1.msra.mxu0 0.0
      %611 = vmatprep.subr.mxu0 0.0
      %612 = vmatpush1.msra.mxu0 0.0
      %613 = vmatprep.subr.mxu0 0.0
      %614 = vmatpush1.msra.mxu0 0.0
      %615 = vmatprep.subr.mxu0 0.0
      %616 = vmatpush1.msra.mxu0 0.0
      %617 = vmatprep.subr.mxu0 0.0
      %618 = vmatpush1.msra.mxu0 0.0
      %619 = vmatprep.subr.mxu0 0.0
      %620 = vmatpush1.msra.mxu0 0.0
      %621 = vmatprep.subr.mxu0 0.0
      %622 = vmatpush1.msra.mxu0 0.0
      %623 = vmatprep.subr.mxu0 0.0
      %624 = vmatpush1.msra.mxu0 0.0
      %625 = vmatprep.subr.mxu0 0.0
      %626 = vmatpush1.msra.mxu0 0.0
      %627 = vmatprep.subr.mxu0 0.0
      %628 = vmatpush1.msra.mxu0 0.0
      %629 = vmatprep.subr.mxu0 0.0
      %630 = vmatpush1.msra.mxu0 0.0
      %631 = vmatprep.subr.mxu0 0.0
      %632 = vmatpush1.msra.mxu0 0.0
      %633 = vmatprep.subr.mxu0 0.0
      %634 = vmatpush1.msra.mxu0 0.0
      %635 = vmatprep.subr.mxu0 0.0
      %636 = vmatpush1.msra.mxu0 0.0
      %637 = vmatprep.subr.mxu0 0.0
      %638 = vmatpush1.msra.mxu0 0.0
      %639 = vmatprep.subr.mxu0 0.0
      %640 = vmatpush1.msra.mxu0 0.0
      %641 = vmatprep.subr.mxu0 0.0
      %642 = vmatpush1.msra.mxu0 0.0
      %643 = vmatprep.subr.mxu0 0.0
      %644 = vmatpush1.msra.mxu0 0.0
      %645 = vmatprep.mubr.f32.mxu0 0.0
      %646 = vmatmul.mubr.f32.gmra.mrb[0].mxu0 %v576
      %v647 = vpop.f32.mrb[0].mxu0
      %v648 = vadd.f32 %v567, %v647
      %v649 = vpop.f32.mrb[0].mxu0
      %650 = vmatprep.mubr.f32.mxu0 0.0
      %651 = vmatmul.mubr.f32.gmra.mrb[0].mxu0 %v579
      %v652 = vpop.f32.mrb[0].mxu0
      %v653 = vadd.f32 %v572, %v652
      %v654 = vpop.f32.mrb[0].mxu0
      %655 = vdwg.mxu0
      %v656 = vlaneseq
      %v657 = vshrl.u32 %v656, 7
      %v658 = vsub.s32 0, %v657
      %v659 = vrot.slane %v417, %v658
      %v660 = vadd.f32 %v648, %v659
      %v661 = vadd.f32 %v653, %v659
      %v662 = vmul.f32 %v660, 0.01
      %v663 = vmul.f32 %v661, 0.01
      %v664 = vmax.f32 %v660, %v662
      %v665 = vmax.f32 %v661, %v663
      %v666 = vld [vmem:[%s1 + $0x70] sm:$0xff]
      %v667 = vld [vmem:[%s1 + $0x78] sm:$0xff]
      %v668 = vld [vmem:[%s1 + $0x80] sm:$0xff]
      %v669 = vld [vmem:[%s1 + $0x88] sm:$0xff]
      %v670 = vld [vmem:[%s1 + $0x90] sm:$0xff]
      %v671 = vld [vmem:[%s1 + $0x98] sm:$0xff]
      %v672 = vld [vmem:[%s1 + $0xa0] sm:$0xff]
      %v673 = vld [vmem:[%s1 + $0xa8] sm:$0xff]
      %v674 = vld [vmem:[%s1 + $0xb0] sm:$0x1]
      %v676 = vsel %vm155, %v144, 0
      %v679 = vsel %vm155, %v145, 0
      %681 = vmatprep.subr.mxu0 0.0
      %682 = vmatpush1.msra.mxu0 %v664
      %683 = vmatprep.subr.mxu0 0.0
      %684 = vmatpush1.msra.mxu0 %v665
      %685 = vmatprep.subr.mxu0 0.0
      %686 = vmatpush1.msra.mxu0 0.0
      %687 = vmatprep.subr.mxu0 0.0
      %688 = vmatpush1.msra.mxu0 0.0
      %689 = vmatprep.subr.mxu0 0.0
      %690 = vmatpush1.msra.mxu0 0.0
      %691 = vmatprep.subr.mxu0 0.0
      %692 = vmatpush1.msra.mxu0 0.0
      %693 = vmatprep.subr.mxu0 0.0
      %694 = vmatpush1.msra.mxu0 0.0
      %695 = vmatprep.subr.mxu0 0.0
      %696 = vmatpush1.msra.mxu0 0.0
      %697 = vmatprep.subr.mxu0 0.0
      %698 = vmatpush1.msra.mxu0 0.0
      %699 = vmatprep.subr.mxu0 0.0
      %700 = vmatpush1.msra.mxu0 0.0
      %701 = vmatprep.subr.mxu0 0.0
      %702 = vmatpush1.msra.mxu0 0.0
      %703 = vmatprep.subr.mxu0 0.0
      %704 = vmatpush1.msra.mxu0 0.0
      %705 = vmatprep.subr.mxu0 0.0
      %706 = vmatpush1.msra.mxu0 0.0
      %707 = vmatprep.subr.mxu0 0.0
      %708 = vmatpush1.msra.mxu0 0.0
      %709 = vmatprep.subr.mxu0 0.0
      %710 = vmatpush1.msra.mxu0 0.0
      %711 = vmatprep.subr.mxu0 0.0
      %712 = vmatpush1.msra.mxu0 0.0
      %713 = vmatprep.subr.mxu0 0.0
      %714 = vmatpush1.msra.mxu0 0.0
      %715 = vmatprep.subr.mxu0 0.0
      %716 = vmatpush1.msra.mxu0 0.0
      %717 = vmatprep.subr.mxu0 0.0
      %718 = vmatpush1.msra.mxu0 0.0
      %719 = vmatprep.subr.mxu0 0.0
      %720 = vmatpush1.msra.mxu0 0.0
      %721 = vmatprep.subr.mxu0 0.0
      %722 = vmatpush1.msra.mxu0 0.0
      %723 = vmatprep.subr.mxu0 0.0
      %724 = vmatpush1.msra.mxu0 0.0
      %725 = vmatprep.subr.mxu0 0.0
      %726 = vmatpush1.msra.mxu0 0.0
      %727 = vmatprep.subr.mxu0 0.0
      %728 = vmatpush1.msra.mxu0 0.0
      %729 = vmatprep.subr.mxu0 0.0
      %730 = vmatpush1.msra.mxu0 0.0
      %731 = vmatprep.subr.mxu0 0.0
      %732 = vmatpush1.msra.mxu0 0.0
      %733 = vmatprep.subr.mxu0 0.0
      %734 = vmatpush1.msra.mxu0 0.0
      %735 = vmatprep.subr.mxu0 0.0
      %736 = vmatpush1.msra.mxu0 0.0
      %737 = vmatprep.subr.mxu0 0.0
      %738 = vmatpush1.msra.mxu0 0.0
      %739 = vmatprep.subr.mxu0 0.0
      %740 = vmatpush1.msra.mxu0 0.0
      %741 = vmatprep.subr.mxu0 0.0
      %742 = vmatpush1.msra.mxu0 0.0
      %743 = vmatprep.subr.mxu0 0.0
      %744 = vmatpush1.msra.mxu0 0.0
      %745 = vmatprep.mubr.f32.mxu0 0.0
      %746 = vmatmul.mubr.f32.gmra.mrb[0].mxu0 %v676
      %v747 = vpop.f32.mrb[0].mxu0
      %v748 = vadd.f32 0.0, %v747
      %v749 = vpop.f32.mrb[0].mxu0
      %750 = vmatprep.mubr.f32.mxu0 0.0
      %751 = vmatmul.mubr.f32.gmra.mrb[0].mxu0 %v679
      %v752 = vpop.f32.mrb[0].mxu0
      %v753 = vadd.f32 0.0, %v752
      %v754 = vpop.f32.mrb[0].mxu0
      %755 = vdwg.mxu0
      %v757 = vsel %vm493, %v664, 0
      %v760 = vsel %vm493, %v665, 0
      %762 = vmatprep.subr.mxu0 0.0
      %763 = vmatpush1.msra.mxu0 %v670
      %764 = vmatprep.subr.mxu0 0.0
      %765 = vmatpush1.msra.mxu0 %v671
      %766 = vmatprep.subr.mxu0 0.0
      %767 = vmatpush1.msra.mxu0 %v672
      %768 = vmatprep.subr.mxu0 0.0
      %769 = vmatpush1.msra.mxu0 %v673
      %770 = vmatprep.subr.mxu0 0.0
      %771 = vmatpush1.msra.mxu0 0.0
      %772 = vmatprep.subr.mxu0 0.0
      %773 = vmatpush1.msra.mxu0 0.0
      %774 = vmatprep.subr.mxu0 0.0
      %775 = vmatpush1.msra.mxu0 0.0
      %776 = vmatprep.subr.mxu0 0.0
      %777 = vmatpush1.msra.mxu0 0.0
      %778 = vmatprep.subr.mxu0 0.0
      %779 = vmatpush1.msra.mxu0 0.0
      %780 = vmatprep.subr.mxu0 0.0
      %781 = vmatpush1.msra.mxu0 0.0
      %782 = vmatprep.subr.mxu0 0.0
      %783 = vmatpush1.msra.mxu0 0.0
      %784 = vmatprep.subr.mxu0 0.0
      %785 = vmatpush1.msra.mxu0 0.0
      %786 = vmatprep.subr.mxu0 0.0
      %787 = vmatpush1.msra.mxu0 0.0
      %788 = vmatprep.subr.mxu0 0.0
      %789 = vmatpush1.msra.mxu0 0.0
      %790 = vmatprep.subr.mxu0 0.0
      %791 = vmatpush1.msra.mxu0 0.0
      %792 = vmatprep.subr.mxu0 0.0
      %793 = vmatpush1.msra.mxu0 0.0
      %794 = vmatprep.subr.mxu0 0.0
      %795 = vmatpush1.msra.mxu0 0.0
      %796 = vmatprep.subr.mxu0 0.0
      %797 = vmatpush1.msra.mxu0 0.0
      %798 = vmatprep.subr.mxu0 0.0
      %799 = vmatpush1.msra.mxu0 0.0
      %800 = vmatprep.subr.mxu0 0.0
      %801 = vmatpush1.msra.mxu0 0.0
      %802 = vmatprep.subr.mxu0 0.0
      %803 = vmatpush1.msra.mxu0 0.0
      %804 = vmatprep.subr.mxu0 0.0
      %805 = vmatpush1.msra.mxu0 0.0
      %806 = vmatprep.subr.mxu0 0.0
      %807 = vmatpush1.msra.mxu0 0.0
      %808 = vmatprep.subr.mxu0 0.0
      %809 = vmatpush1.msra.mxu0 0.0
      %810 = vmatprep.subr.mxu0 0.0
      %811 = vmatpush1.msra.mxu0 0.0
      %812 = vmatprep.subr.mxu0 0.0
      %813 = vmatpush1.msra.mxu0 0.0
      %814 = vmatprep.subr.mxu0 0.0
      %815 = vmatpush1.msra.mxu0 0.0
      %816 = vmatprep.subr.mxu0 0.0
      %817 = vmatpush1.msra.mxu0 0.0
      %818 = vmatprep.subr.mxu0 0.0
      %819 = vmatpush1.msra.mxu0 0.0
      %820 = vmatprep.subr.mxu0 0.0
      %821 = vmatpush1.msra.mxu0 0.0
      %822 = vmatprep.subr.mxu0 0.0
      %823 = vmatpush1.msra.mxu0 0.0
      %824 = vmatprep.subr.mxu0 0.0
      %825 = vmatpush1.msra.mxu0 0.0
      %826 = vmatprep.mubr.f32.mxu0 0.0
      %827 = vmatmul.mubr.f32.gmra.mrb[0].mxu0 %v757
      %v828 = vpop.f32.mrb[0].mxu0
      %v829 = vadd.f32 0.0, %v828
      %v830 = vpop.f32.mrb[0].mxu0
      %831 = vmatprep.mubr.f32.mxu0 0.0
      %832 = vmatmul.mubr.f32.gmra.mrb[0].mxu0 %v760
      %v833 = vpop.f32.mrb[0].mxu0
      %v834 = vadd.f32 0.0, %v833
      %v835 = vpop.f32.mrb[0].mxu0
      %836 = vdwg.mxu0
      %v838 = vsel %vm493, %v748, 0
      %v841 = vsel %vm493, %v753, 0
      %843 = vmatprep.subr.mxu0 0.0
      %844 = vmatpush1.msra.mxu0 %v666
      %845 = vmatprep.subr.mxu0 0.0
      %846 = vmatpush1.msra.mxu0 %v667
      %847 = vmatprep.subr.mxu0 0.0
      %848 = vmatpush1.msra.mxu0 %v668
      %849 = vmatprep.subr.mxu0 0.0
      %850 = vmatpush1.msra.mxu0 %v669
      %851 = vmatprep.subr.mxu0 0.0
      %852 = vmatpush1.msra.mxu0 0.0
      %853 = vmatprep.subr.mxu0 0.0
      %854 = vmatpush1.msra.mxu0 0.0
      %855 = vmatprep.subr.mxu0 0.0
      %856 = vmatpush1.msra.mxu0 0.0
      %857 = vmatprep.subr.mxu0 0.0
      %858 = vmatpush1.msra.mxu0 0.0
      %859 = vmatprep.subr.mxu0 0.0
      %860 = vmatpush1.msra.mxu0 0.0
      %861 = vmatprep.subr.mxu0 0.0
      %862 = vmatpush1.msra.mxu0 0.0
      %863 = vmatprep.subr.mxu0 0.0
      %864 = vmatpush1.msra.mxu0 0.0
      %865 = vmatprep.subr.mxu0 0.0
      %866 = vmatpush1.msra.mxu0 0.0
      %867 = vmatprep.subr.mxu0 0.0
      %868 = vmatpush1.msra.mxu0 0.0
      %869 = vmatprep.subr.mxu0 0.0
      %870 = vmatpush1.msra.mxu0 0.0
      %871 = vmatprep.subr.mxu0 0.0
      %872 = vmatpush1.msra.mxu0 0.0
      %873 = vmatprep.subr.mxu0 0.0
      %874 = vmatpush1.msra.mxu0 0.0
      %875 = vmatprep.subr.mxu0 0.0
      %876 = vmatpush1.msra.mxu0 0.0
      %877 = vmatprep.subr.mxu0 0.0
      %878 = vmatpush1.msra.mxu0 0.0
      %879 = vmatprep.subr.mxu0 0.0
      %880 = vmatpush1.msra.mxu0 0.0
      %881 = vmatprep.subr.mxu0 0.0
      %882 = vmatpush1.msra.mxu0 0.0
      %883 = vmatprep.subr.mxu0 0.0
      %884 = vmatpush1.msra.mxu0 0.0
      %885 = vmatprep.subr.mxu0 0.0
      %886 = vmatpush1.msra.mxu0 0.0
      %887 = vmatprep.subr.mxu0 0.0
      %888 = vmatpush1.msra.mxu0 0.0
      %889 = vmatprep.subr.mxu0 0.0
      %890 = vmatpush1.msra.mxu0 0.0
      %891 = vmatprep.subr.mxu0 0.0
      %892 = vmatpush1.msra.mxu0 0.0
      %893 = vmatprep.subr.mxu0 0.0
      %894 = vmatpush1.msra.mxu0 0.0
      %895 = vmatprep.subr.mxu0 0.0
      %896 = vmatpush1.msra.mxu0 0.0
      %897 = vmatprep.subr.mxu0 0.0
      %898 = vmatpush1.msra.mxu0 0.0
      %899 = vmatprep.subr.mxu0 0.0
      %900 = vmatpush1.msra.mxu0 0.0
      %901 = vmatprep.subr.mxu0 0.0
      %902 = vmatpush1.msra.mxu0 0.0
      %903 = vmatprep.subr.mxu0 0.0
      %904 = vmatpush1.msra.mxu0 0.0
      %905 = vmatprep.subr.mxu0 0.0
      %906 = vmatpush1.msra.mxu0 0.0
      %907 = vmatprep.mubr.f32.mxu0 0.0
      %908 = vmatmul.mubr.f32.gmra.mrb[0].mxu0 %v838
      %v909 = vpop.f32.mrb[0].mxu0
      %v910 = vadd.f32 %v829, %v909
      %v911 = vpop.f32.mrb[0].mxu0
      %912 = vmatprep.mubr.f32.mxu0 0.0
      %913 = vmatmul.mubr.f32.gmra.mrb[0].mxu0 %v841
      %v914 = vpop.f32.mrb[0].mxu0
      %v915 = vadd.f32 %v834, %v914
      %v916 = vpop.f32.mrb[0].mxu0
      %917 = vdwg.mxu0
      %v918 = vlaneseq
      %v919 = vshrl.u32 %v918, 7
      %v920 = vsub.s32 0, %v919
      %v921 = vrot.slane %v674, %v920
      %v922 = vadd.f32 %v910, %v921
      %v923 = vadd.f32 %v915, %v921
      %v924 = vmul.f32 %v922, 0.01
      %v925 = vmul.f32 %v923, 0.01
      %v926 = vmax.f32 %v922, %v924
      %v927 = vmax.f32 %v923, %v925
      %v929 = vsel %vm155, %v146, 0
      %931 = vmatprep.subr.mxu0 0.0
      %932 = vmatpush1.msra.mxu0 %v926
      %933 = vmatprep.subr.mxu0 0.0
      %934 = vmatpush1.msra.mxu0 %v927
      %935 = vmatprep.subr.mxu0 0.0
      %936 = vmatpush1.msra.mxu0 0.0
      %937 = vmatprep.subr.mxu0 0.0
      %938 = vmatpush1.msra.mxu0 0.0
      %939 = vmatprep.subr.mxu0 0.0
      %940 = vmatpush1.msra.mxu0 0.0
      %941 = vmatprep.subr.mxu0 0.0
      %942 = vmatpush1.msra.mxu0 0.0
      %943 = vmatprep.subr.mxu0 0.0
      %944 = vmatpush1.msra.mxu0 0.0
      %945 = vmatprep.subr.mxu0 0.0
      %946 = vmatpush1.msra.mxu0 0.0
      %947 = vmatprep.subr.mxu0 0.0
      %948 = vmatpush1.msra.mxu0 0.0
      %949 = vmatprep.subr.mxu0 0.0
      %950 = vmatpush1.msra.mxu0 0.0
      %951 = vmatprep.subr.mxu0 0.0
      %952 = vmatpush1.msra.mxu0 0.0
      %953 = vmatprep.subr.mxu0 0.0
      %954 = vmatpush1.msra.mxu0 0.0
      %955 = vmatprep.subr.mxu0 0.0
      %956 = vmatpush1.msra.mxu0 0.0
      %957 = vmatprep.subr.mxu0 0.0
      %958 = vmatpush1.msra.mxu0 0.0
      %959 = vmatprep.subr.mxu0 0.0
      %960 = vmatpush1.msra.mxu0 0.0
      %961 = vmatprep.subr.mxu0 0.0
      %962 = vmatpush1.msra.mxu0 0.0
      %963 = vmatprep.subr.mxu0 0.0
      %964 = vmatpush1.msra.mxu0 0.0
      %965 = vmatprep.subr.mxu0 0.0
      %966 = vmatpush1.msra.mxu0 0.0
      %967 = vmatprep.subr.mxu0 0.0
      %968 = vmatpush1.msra.mxu0 0.0
      %969 = vmatprep.subr.mxu0 0.0
      %970 = vmatpush1.msra.mxu0 0.0
      %971 = vmatprep.subr.mxu0 0.0
      %972 = vmatpush1.msra.mxu0 0.0
      %973 = vmatprep.subr.mxu0 0.0
      %974 = vmatpush1.msra.mxu0 0.0
      %975 = vmatprep.subr.mxu0 0.0
      %976 = vmatpush1.msra.mxu0 0.0
      %977 = vmatprep.subr.mxu0 0.0
      %978 = vmatpush1.msra.mxu0 0.0
      %979 = vmatprep.subr.mxu0 0.0
      %980 = vmatpush1.msra.mxu0 0.0
      %981 = vmatprep.subr.mxu0 0.0
      %982 = vmatpush1.msra.mxu0 0.0
      %983 = vmatprep.subr.mxu0 0.0
      %984 = vmatpush1.msra.mxu0 0.0
      %985 = vmatprep.subr.mxu0 0.0
      %986 = vmatpush1.msra.mxu0 0.0
      %987 = vmatprep.subr.mxu0 0.0
      %988 = vmatpush1.msra.mxu0 0.0
      %989 = vmatprep.subr.mxu0 0.0
      %990 = vmatpush1.msra.mxu0 0.0
      %991 = vmatprep.subr.mxu0 0.0
      %992 = vmatpush1.msra.mxu0 0.0
      %993 = vmatprep.subr.mxu0 0.0
      %994 = vmatpush1.msra.mxu0 0.0
      %995 = vmatprep.mubr.f32.mxu0 0.0
      %996 = vmatmul.mubr.f32.gmra.mrb[0].mxu0 %v929
      %v997 = vpop.f32.mrb[0].mxu0
      %v998 = vadd.f32 0.0, %v997
      %v999 = vpop.f32.mrb[0].mxu0
      %1000 = vdwg.mxu0
      %v1001 = vlaneseq
      %v1002 = vshrl.u32 %v1001, 7
      %v1003 = vsub.s32 0, %v1002
      %v1004 = vrot.slane %v147, %v1003
      %1006 = vbcast.lane.b32.xlu0 %v1004, 256
      %v1007 = vpop.permute.xlu0 %1006
      %s1009 = sor.u32 256, 8
      %1010 = vbcast.lane.b32.xlu0 %v1004, %s1009
      %v1011 = vpop.permute.xlu0 %1010
      %v1012 = vlaneseq
      %v1013 = vshrl.u32 %v1012, 7
      %v1014 = vsub.s32 1, %v1013
      %v1015 = vrot.slane %v147, %v1014
      %1017 = vbcast.lane.b32.xlu0 %v1015, 256
      %v1018 = vpop.permute.xlu0 %1017
      %s1020 = sor.u32 256, 8
      %1021 = vbcast.lane.b32.xlu0 %v1015, %s1020
      %v1022 = vpop.permute.xlu0 %1021
      %v1023 = vadd.f32 %v926, %v1007
      %v1024 = vadd.f32 %v927, %v1011
      %v1025 = vadd.f32 %v926, %v1018
      %v1026 = vadd.f32 %v927, %v1022
      %v1027 = vsel %vm493, %v1023, -inf
      %v1028 = vsel %vm493, %v1024, -inf
      %v1029 = vmax.f32 %v1027, %v1028
      %v1030 = vrot.slane %v1029, 4
      %v1031 = vmax.f32 %v1029, %v1030
      %v1032 = vrot.slane %v1031, 2
      %v1033 = vmax.f32 %v1031, %v1032
      %v1034 = vrot.slane %v1033, 1
      %v1035 = vmax.f32 %v1033, %v1034
      %v1036 = vsel %vm493, %v1025, -inf
      %v1037 = vsel %vm493, %v1026, -inf
      %v1038 = vmax.f32 %v1036, %v1037
      %v1039 = vrot.slane %v1038, 4
      %v1040 = vmax.f32 %v1038, %v1039
      %v1041 = vrot.slane %v1040, 2
      %v1042 = vmax.f32 %v1040, %v1041
      %v1043 = vrot.slane %v1042, 1
      %v1044 = vmax.f32 %v1042, %v1043
      %v1045 = vld [vmem:[%s1 + $0xb8] sm:$0xff]
      %v1046 = vlaneseq
      %v1047 = vshrl.u32 %v1046, 7
      %v1048 = vsub.s32 0, %v1047
      %v1049 = vrot.slane %v1045, %v1048
      %v1050 = vmul.f32 %v998, %v1049
      %v1051 = vlaneseq
      %v1052 = vshrl.u32 %v1051, 7
      %v1053 = vsub.s32 1, %v1052
      %v1054 = vrot.slane %v1045, %v1053
      %v1055 = vmul.f32 %v1035, %v1054
      %v1056 = vmul.f32 %v1044, %v1054
      %v1059 = vrot.slane %v1056, 7
      %vm1060 = vcmask 1041409
      %v1061 = vsel %vm1060, %v1059, %v1055
      %v1063 = vadd.f32 %v1050, %v1061
      %vm1064 = vcmask 254976
      %v1065 = vsel %vm1064, %v1063, 0.0
      %1066 = vadd.xlane.f32.xlu0 %v1065
      %v1067 = vpop.xlane.xlu0 %1066
      %v1068 = vlaneseq
      %v1069 = vshrl.u32 %v1068, 7
      %v1070 = vsub.s32 2, %v1069
      %v1071 = vrot.slane %v1045, %v1070
      %v1072 = vadd.f32 %v1067, %v1071
      %vm1073 = vcmask 1024
      %1074 = vst.msk [vmem:[%s141] sm:$0x3] %vm1073, %v1072
      %p1075 = scmp.lt.s32.totalorder %s13, 3
      %s1076 = scalar_select %p1075, %s13, 3
      %s1077 = smul.addr %s1076, 2
      %s1078 = scalar_lea.vmem %s2, %s1077
      // Predicated region
      $region29: #{tpu_custom_call.1} parent=27 // pred_check
        %p1079 = pneg %p78
      $region30: #{tpu_custom_call.1} parent=27 // pred_check_branch
        %1081 = sbr.rel (%p1079) target = $region32
      $region31: #{tpu_custom_call.1} parent=27 // pred_region
        _
      $region32: #{tpu_custom_call.1} parent=27 // pred_fallthru
        _
    $region28: #{tpu_custom_call.1} parent=5 // pred_fallthru
      _
    %p1082 = scmp.le.s32.totalorder 2, %s8
    // Predicated region
    $region33: #{tpu_custom_call.1} parent=5 // pred_check
      %p1083 = pneg %p1082
    $region34: #{tpu_custom_call.1} parent=5 // pred_check_branch
      %1085 = sbr.rel (%p1083) target = $region36
    $region35: #{tpu_custom_call.1} parent=5 // pred_region
      %s1086 = ssub.s32 %s8, 2
      // Predicated region
      $region37: #{tpu_custom_call.1} parent=35 // pred_check
        %p1087 = pneg %p84
      $region38: #{tpu_custom_call.1} parent=35 // pred_check_branch
        %1089 = sbr.rel (%p1087) target = $region40
      $region39: #{tpu_custom_call.1} parent=35 // pred_region
        %p1090 = scmp.lt.s32.totalorder %s14, 3
        %s1091 = scalar_select %p1090, %s14, 3
        %s1092 = smul.addr %s1091, 2
        %s1093 = scalar_lea.vmem %s2, %s1092
      $region40: #{tpu_custom_call.1} parent=35 // pred_fallthru
        _
    $region36: #{tpu_custom_call.1} parent=5 // pred_fallthru
      _
  $region6: #{tpu_custom_call.1} parent=0 // loop_footer
    %s12 = sadd.s32 1, %s8
  $region7: #{tpu_custom_call.1} parent=0 // loop_footer_branch
    %7 = sbr.rel target = $region3
  $region8: #{tpu_custom_call.1} parent=0 // loop_exit
    _

</llo_original>
